<compile_context>
chip_gen: v6e
topology: v6e:2x2x1
jax: 0.10.0
libtpu: 0.0.40
codegen_flags: <defaults>
</compile_context>

<pallas_src>
import jax
import jax.numpy as jnp
from jax.experimental import pallas as pl
from jax.experimental.pallas import tpu as pltpu


def _cdiv(a, b):
    return -(-a // b)


def _make_kernel(B, L, tb, steps, need_mask):
    """Build the per-tile kernel.  All arguments are static Python ints/bools."""
    vectorized = (tb % 8 == 0) and (L % 128 == 0)

    def kernel(mask_ref, out_ref):
        s = pl.program_id(1)  # reduction axis (last in the grid)

        @pl.when(s == 0)
        def _():
            out_ref[...] = jnp.zeros_like(out_ref)

        # Single in-kernel cast (VPU); HBM only ever sees the native dtype.
        m = mask_ref[...].astype(jnp.float32)

        if need_mask:
            # Zero out rows past the real batch (partial tail tile, or a
            # duplicate tile produced by the clamped megacore split).  Applied
            # BEFORE any arithmetic so undefined pad data never propagates.
            tile = pl.program_id(0) * steps + s
            row_ids = tile * tb + jax.lax.broadcasted_iota(jnp.int32, (tb, L), 0)
            m = jnp.where(row_ids < B, m, 0.0)

        extra = None
        if L <= 1:
            contrib = m                                     # continuity term is 0
        elif L % 128 == 0:
            # Lane-aligned: full-width XLU rotate; column 0 carries the
            # wrap-around pair, masked off with a lane iota.
            shifted = pltpu.roll(m, shift=1, axis=1)
            col_ids = jax.lax.broadcasted_iota(jnp.int32, (tb, L), 1)
            contrib = m + jnp.where(col_ids > 0, jnp.abs(m - shifted), 0.0)
        else:
            # TODO(synk): for LARGE unaligned L, a masked pltpu.roll would keep
            # every op on full (8,128) tiles; slices are fine for small L.
            contrib = m
            extra = jnp.sum(jnp.abs(m[:, : L - 1] - m[:, 1:]))

        if vectorized:
            # Fused, vectorized accumulation: fold (tb, L) onto the resident
            # (8,128) block with vreg-wise adds only (no cross-lane collapse).
            partial = contrib.reshape(tb // 8, 8, L // 128, 128)
            partial = partial.sum(axis=0).sum(axis=1)        # -> (8, 128)
            out_ref[...] += partial
        else:
            # Small / unaligned shapes: scalar-collapse this tile and deposit
            # it at [0, 0] of the residency block.
            total = jnp.sum(contrib)
            if extra is not None:
                total = total + extra
            r = jax.lax.broadcasted_iota(jnp.int32, (8, 128), 0)
            c = jax.lax.broadcasted_iota(jnp.int32, (8, 128), 1)
            out_ref[...] += jnp.where((r == 0) & (c == 0), total, 0.0)

    return kernel


def _pick_batch_tile(B, L, in_bytes, budget_bytes):
    """Batch tile sized by bytes: double-buffered input + ~3x f32 temps."""
    if B <= 8:
        return B  # full-dim block (allowed even when < 8)
    per_row = L * (2 * in_bytes + 3 * 4)
    tb = (budget_bytes // max(per_row, 1)) // 8 * 8
    tb = max(8, min(tb, (B // 8) * 8))   # never exceed the array's batch dim
    # TODO(synk): if a single row (L) ever exceeds the VMEM budget, tile L as
    # the last grid axis and carry the boundary column in SMEM for the |diff|.
    return tb


def sparse_loss(outputs_support, outputs_delete, targets, masks, *,
                sparse_norm_coeff, vmem_budget_bytes=24 * 1024 * 1024):
    # outputs_delete / targets are not used by the reference forward pass.
    del outputs_delete, targets
    B, L = masks.shape
    in_bytes = jnp.dtype(masks.dtype).itemsize

    tb = _pick_batch_tile(B, L, in_bytes, vmem_budget_bytes)
    num_tiles = _cdiv(B, tb)

    # v7x has two TensorCores: always split >=2 tiles across a leading
    # "parallel" axis; odd tile counts get a clamped, masked duplicate tile.
    n_par = 2 if num_tiles >= 2 else 1
    steps = _cdiv(num_tiles, n_par)
    need_mask = (n_par * steps * tb) > B

    if n_par * steps == num_tiles:
        in_map = lambda p, s: (p * steps + s, 0)
    else:
        last = num_tiles - 1
        in_map = lambda p, s: (jnp.minimum(p * steps + s, last), 0)

    kernel = _make_kernel(B, L, tb, steps, need_mask)

    out = pl.pallas_call(
        kernel,
        out_shape=jax.ShapeDtypeStruct((8 * n_par, 128), jnp.float32),
        grid_spec=pltpu.PrefetchScalarGridSpec(
            num_scalar_prefetch=0,
            grid=(n_par, steps),
            in_specs=[pl.BlockSpec((tb, L), in_map)],
            out_specs=pl.BlockSpec((8, 128), lambda p, s: (p, 0)),
        ),
        compiler_params=pltpu.CompilerParams(
            dimension_semantics=("parallel", "arbitrary"),
            vmem_limit_bytes=48 * 1024 * 1024,
        ),
    )(masks)  # masks in native dtype: no wrapper-side upcast / extra HBM bytes

    # Collapse the vectorized per-core partials once, at trace level.
    total_sums = jnp.sum(out)            # sum_b sum_l m  +  sum_b sum_l |diff|
    coeff_over_b = float(sparse_norm_coeff) / B
    return outputs_support[0].astype(jnp.float32) + coeff_over_b * total_sums


def _reference(outputs_support, masks, sparse_norm_coeff):
    """Pure-JAX reference mirroring the PyTorch module literally."""
    masks = masks.astype(jnp.float32)
    sparse_ref = jnp.mean(jnp.sum(masks, axis=1))
    l_pad = jnp.concatenate([masks[:, :1], masks], axis=1)
    r_pad = jnp.concatenate([masks, masks[:, -1:]], axis=1)
    cont_ref = jnp.mean(jnp.sum(jnp.abs(l_pad - r_pad), axis=1))
    return outputs_support[0] + sparse_norm_coeff * (sparse_ref + cont_ref)


if __name__ == "__main__":
    key = jax.random.PRNGKey(0)
    k1, k2, k3, k4, k5 = jax.random.split(key, 5)

    sparse_norm_coeff = 0.5  # model_kwargs['sparse_norm']
    num_classes = 2          # self.k / num_classes are unused in forward
    outputs_support = jax.random.uniform(k1, (num_classes,), dtype=jnp.float32)

    # --- 1) demo shapes consistent with the module (tiny, single-block path) ---
    B, L = 2, 16
    outputs_delete = jnp.zeros((B, num_classes), jnp.float32)  # unused
    targets = jnp.zeros((B,), jnp.int32)                       # unused
    masks = jax.random.uniform(k2, (B, L), dtype=jnp.float32)
    loss = sparse_loss(outputs_support, outputs_delete, targets, masks,
                       sparse_norm_coeff=sparse_norm_coeff)
    loss = jax.block_until_ready(loss)
    ref = _reference(outputs_support, masks, sparse_norm_coeff)
    assert jnp.allclose(loss, ref, rtol=1e-5, atol=1e-5), (float(loss), float(ref))

    # --- 2) gridded / vectorized path: batch tiling, 2-way megacore split,
    #        resident (8,128) accumulator, roll-based continuity ---
    B2, L2 = 32, 256
    masks2 = jax.random.uniform(k3, (B2, L2), dtype=jnp.float32)
    loss2 = sparse_loss(outputs_support, None, None, masks2,
                        sparse_norm_coeff=sparse_norm_coeff,
                        vmem_budget_bytes=48_000)   # force tb=8 -> grid (2, 2)
    loss2 = jax.block_until_ready(loss2)
    ref2 = _reference(outputs_support, masks2, sparse_norm_coeff)
    assert jnp.allclose(loss2, ref2, rtol=1e-5, atol=1e-4), (float(loss2), float(ref2))

    # --- 3) ragged batch: partial tail tile + clamped duplicate tile, both
    #        zeroed by the in-kernel row mask ---
    B3, L3 = 20, 256
    masks3 = jax.random.uniform(k4, (B3, L3), dtype=jnp.float32)
    loss3 = sparse_loss(outputs_support, None, None, masks3,
                        sparse_norm_coeff=sparse_norm_coeff,
                        vmem_budget_bytes=48_000)   # tb=8 -> 3 tiles over grid (2, 2)
    loss3 = jax.block_until_ready(loss3)
    ref3 = _reference(outputs_support, masks3, sparse_norm_coeff)
    assert jnp.allclose(loss3, ref3, rtol=1e-5, atol=1e-4), (float(loss3), float(ref3))

    # --- 4) bf16 masks streamed in native dtype (halved HBM bytes) ---
    B4, L4 = 16, 128
    masks4 = jax.random.uniform(k5, (B4, L4), dtype=jnp.float32).astype(jnp.bfloat16)
    loss4 = sparse_loss(outputs_support, None, None, masks4,
                        sparse_norm_coeff=sparse_norm_coeff)
    loss4 = jax.block_until_ready(loss4)
    ref4 = _reference(outputs_support, masks4, sparse_norm_coeff)
    assert jnp.allclose(loss4, ref4, rtol=1e-4, atol=1e-3), (float(loss4), float(ref4))

    print("KERNEL_OK")
</pallas_src>

<mosaic_0001>
module attributes {stable_mosaic.version = 11 : i64} {
  func.func @kernel(%arg0: i32, %arg1: i32, %arg2: memref<2x16xf32, #tpu.memory_space<vmem>>, %arg3: memref<8x128xf32, #tpu.memory_space<vmem>>) attributes {dimension_semantics = [#tpu.dimension_semantics<parallel>, #tpu.dimension_semantics<arbitrary>], iteration_bounds = array<i64: 1, 1>, scalar_prefetch = 0 : i64, scratch_operands = 0 : i64, tpu.core_type = #tpu.core_type<tc>, window_params = [{transform_indices = @transform_0, window_bounds = array<i64: 2, 16>}, {transform_indices = @transform_1, window_bounds = array<i64: 8, 128>}]} {
    %c0_i32 = arith.constant 0 : i32
    %0 = arith.cmpi eq, %arg1, %c0_i32 : i32
    %1 = arith.extui %0 : i1 to i32
    %c0_i32_0 = arith.constant 0 : i32
    %2 = arith.cmpi ne, %1, %c0_i32_0 : i32
    scf.if %2 {
      %cst_10 = arith.constant 0.000000e+00 : f32
      %30 = vector.broadcast %cst_10 : f32 to vector<8x128xf32>
      %c0_11 = arith.constant 0 : index
      %c0_12 = arith.constant 0 : index
      %31 = vector.load %arg3[%c0_11, %c0_12] : memref<8x128xf32, #tpu.memory_space<vmem>>, vector<8x128xf32>
      tpu.vector_store %arg3[%c0_11, %c0_12], %30 {strides = array<i32>} : memref<8x128xf32, #tpu.memory_space<vmem>>, vector<8x128xf32>,
    } else {
    }
    %c0 = arith.constant 0 : index
    %c0_1 = arith.constant 0 : index
    %3 = vector.load %arg2[%c0, %c0_1] : memref<2x16xf32, #tpu.memory_space<vmem>>, vector<2x16xf32>
    %4 = vector.extract_strided_slice %3 {offsets = [0, 0], sizes = [2, 15], strides = [1, 1]} : vector<2x16xf32> to vector<2x15xf32>
    %5 = vector.extract_strided_slice %3 {offsets = [0, 1], sizes = [2, 15], strides = [1, 1]} : vector<2x16xf32> to vector<2x15xf32>
    %6 = arith.subf %4, %5 : vector<2x15xf32>
    %7 = math.absf %6 : vector<2x15xf32>
    %8 = vector.shape_cast %7 : vector<2x15xf32> to vector<1x2x15xf32>
    %cst = arith.constant dense<0.000000e+00> : vector<1xf32>
    %9 = vector.multi_reduction <add>, %8, %cst [1, 2] : vector<1x2x15xf32> to vector<1xf32>
    %10 = vector.shape_cast %9 : vector<1xf32> to vector<1x1x1xf32>
    %11 = vector.extract %10[0, 0, 0] : f32 from vector<1x1x1xf32>
    %12 = vector.shape_cast %3 : vector<2x16xf32> to vector<1x2x16xf32>
    %cst_2 = arith.constant dense<0.000000e+00> : vector<1xf32>
    %13 = vector.multi_reduction <add>, %12, %cst_2 [1, 2] : vector<1x2x16xf32> to vector<1xf32>
    %14 = vector.shape_cast %13 : vector<1xf32> to vector<1x1x1xf32>
    %15 = vector.extract %14[0, 0, 0] : f32 from vector<1x1x1xf32>
    %16 = arith.addf %15, %11 : f32
    %17 = tpu.iota {dimensions = array<i32: 0>} : vector<8x128xi32>
    %18 = tpu.iota {dimensions = array<i32: 1>} : vector<8x128xi32>
    %c0_3 = arith.constant 0 : index
    %c0_4 = arith.constant 0 : index
    %19 = vector.load %arg3[%c0_3, %c0_4] : memref<8x128xf32, #tpu.memory_space<vmem>>, vector<8x128xf32>
    %c0_i32_5 = arith.constant 0 : i32
    %20 = vector.broadcast %c0_i32_5 : i32 to vector<8x128xi32>
    %21 = arith.cmpi eq, %17, %20 : vector<8x128xi32>
    %c0_i32_6 = arith.constant 0 : i32
    %22 = vector.broadcast %c0_i32_6 : i32 to vector<8x128xi32>
    %23 = arith.cmpi eq, %18, %22 : vector<8x128xi32>
    %24 = arith.andi %21, %23 : vector<8x128xi1>
    %cst_7 = arith.constant 0.000000e+00 : f32
    %25 = vector.broadcast %16 : f32 to vector<8x128xf32>
    %26 = vector.broadcast %cst_7 : f32 to vector<8x128xf32>
    %27 = arith.select %24, %25, %26 : vector<8x128xi1>, vector<8x128xf32>
    %28 = arith.addf %19, %27 : vector<8x128xf32>
    %c0_8 = arith.constant 0 : index
    %c0_9 = arith.constant 0 : index
    %29 = vector.load %arg3[%c0_8, %c0_9] : memref<8x128xf32, #tpu.memory_space<vmem>>, vector<8x128xf32>
    tpu.vector_store %arg3[%c0_8, %c0_9], %28 {strides = array<i32>} : memref<8x128xf32, #tpu.memory_space<vmem>>, vector<8x128xf32>,
    return
  }
  func.func @transform_0(%arg0: i32, %arg1: i32) -> (i32, i32) {
    %c1_i32 = arith.constant 1 : i32
    %0 = arith.muli %arg0, %c1_i32 : i32
    %1 = arith.addi %0, %arg1 : i32
    %c0_i32 = arith.constant 0 : i32
    %c0_i32_0 = arith.constant 0 : i32
    return %1, %c0_i32 : i32, i32
  }
  func.func @transform_1(%arg0: i32, %arg1: i32) -> (i32, i32) {
    %c0_i32 = arith.constant 0 : i32
    %c0_i32_0 = arith.constant 0 : i32
    return %arg0, %c0_i32 : i32, i32
  }
}

</mosaic_0001>

<llo_original>
// kernel: tpu_custom_call.1
$region0: #{tpu_custom_call.1}
  #allocation0 [shape = 'u32[]', space=smem, size = 0x4, offset = 0x4, fixed_abs, tag = 'smem constant byte address 0x4 - core index']
  #allocation1 [shape = 'u32[144,128]{1,0:T(1,128)}', space=vmem, size = 0x12000, scoped, tag = 'internal scratch']
  %s0 = inlined_call_operand.hbm [shape: f32[2,16], index: 0, kind: input, shape index: {}]
  %s1 = inlined_call_operand.hbm [shape: f32[8,128], index: 1, kind: output, shape index: {}]
  %s2 = sld [smem:[#allocation0]]
  $region22: #{tpu_custom_call.1} parent=0
    _
  %s4 = ssub.s32 1, %s2
  %s5 = scalar_select 0, %s4, %s2
  $region1: #{tpu_custom_call.1} parent=0
    #allocation2 [shape = 'u8[1024]{0}', space=vmem, size = 0x400, scoped, tag = 'input window, operand 0, single buffered']
    #allocation3 [shape = 's32[1]{0}', space=sflag, size = 0x4, scoped, tag = 'scoped memory for tpu_custom_call.1']
    #allocation4 [shape = 's32[1]{0}', space=sflag, size = 0x4, scoped, tag = 'scoped memory for tpu_custom_call.1']
    #allocation5 [shape = 'u8[4096]{0}', space=vmem, size = 0x1000, scoped, tag = 'output window, operand 0, single buffered']
    %6 = vsyncpa [#allocation3], 0
    %7 = vsyncpa [#allocation4], 0
    // Predicated region
    $region2: #{tpu_custom_call.1} parent=1 // pred_check
      _
    $region3: #{tpu_custom_call.1} parent=1 // pred_check_branch
      %9 = sbr.rel (0) target = $region5
    $region4: #{tpu_custom_call.1} parent=1 // pred_region
      %s10 = sadd.s32 0, 0
      %s12 = ssub.s32 32, 32
      %13 = vsyncadd [#allocation3], %s12
      %s14 = smul.addr %s10, 32
      %s15 = scalar_lea.hbm %s0, %s14
      %s17 = sshll.u32 [#allocation2], 4
      %s18 = int_to_ptr.vmem [resolvable:$true] %s17
      %20 = dma.hbm_to_vmem [thread:$0]  %s15, 32, %s18, [#allocation3]
    $region5: #{tpu_custom_call.1} parent=1 // pred_fallthru
      _
    // Predicated region
    $region6: #{tpu_custom_call.1} parent=1 // pred_check
      _
    $region7: #{tpu_custom_call.1} parent=1 // pred_check_branch
      %22 = sbr.rel (0) target = $region9
    $region8: #{tpu_custom_call.1} parent=1 // pred_region
      %23 = dma.done [#allocation3], 32
    $region9: #{tpu_custom_call.1} parent=1 // pred_fallthru
      _
    %s24 = sadd.s32 0, 0
    %p25 = scmp.eq.s32.totalorder 0, 0
    // Predicated region
    $region10: #{tpu_custom_call.1} parent=1 // pred_check
      %p26 = pneg %p25
    $region11: #{tpu_custom_call.1} parent=1 // pred_check_branch
      %28 = sbr.rel (%p26) target = $region13
    $region12: #{tpu_custom_call.1} parent=1 // pred_region
      %29 = vst [vmem:[#allocation5] sm:$0xff] 0.0
    $region13: #{tpu_custom_call.1} parent=1 // pred_fallthru
      _
    %v30 = vld [vmem:[#allocation2] sm:$0x3]
    %32 = vrot.lane.b32.xlu0 %v30, 127
    %v33 = vpop.permute.xlu0 %32
    %v35 = vsub.f32 %v30, %v33
    %v36 = vand.u32 2147483647, %v35
    %vm37 = vcmask 115712
    %v38 = vsel %vm37, %v36, 0.0
    %39 = vadd.xlane.f32.xlu0 %v38
    %v40 = vpop.xlane.xlu0 %39
    %v41 = vrot.slane %v40, 4
    %v42 = vadd.f32 %v40, %v41
    %v43 = vrot.slane %v42, 2
    %v44 = vadd.f32 %v42, %v43
    %v45 = vrot.slane %v44, 1
    %v46 = vadd.f32 %v44, %v45
    %s47 = vtos %v46
    %vm48 = vcmask 123904
    %v49 = vsel %vm48, %v30, 0.0
    %50 = vadd.xlane.f32.xlu0 %v49
    %v51 = vpop.xlane.xlu0 %50
    %v52 = vrot.slane %v51, 4
    %v53 = vadd.f32 %v51, %v52
    %v54 = vrot.slane %v53, 2
    %v55 = vadd.f32 %v53, %v54
    %v56 = vrot.slane %v55, 1
    %v57 = vadd.f32 %v55, %v56
    %s58 = vtos %v57
    %s59 = sadd.f32 %s58, %s47
    %v60 = vlaneseq
    %v61 = vshrl.u32 %v60, 7
    %v62 = vlaneseq
    %v63 = vand.u32 %v62, 127
    %v64 = vld [vmem:[#allocation5] sm:$0xff]
    %vm65 = vcmp.eq.s32.totalorder %v61, 0
    %vm66 = vcmp.eq.s32.totalorder %v63, 0
    %vm67 = vmand %vm65, %vm66
    %v68 = vstv %s59
    %v69 = vsel %vm67, %v68, 0.0
    %v70 = vadd.f32 %v64, %v69
    %71 = vst [vmem:[#allocation5] sm:$0xff] %v70
    // Predicated region
    $region14: #{tpu_custom_call.1} parent=1 // pred_check
      _
    $region15: #{tpu_custom_call.1} parent=1 // pred_check_branch
      %73 = sbr.rel (0) target = $region17
    $region16: #{tpu_custom_call.1} parent=1 // pred_region
      %s75 = ssub.s32 128, 128
      %76 = vsyncadd [#allocation4], %s75
      %s78 = sshll.u32 [#allocation5], 4
      %s79 = int_to_ptr.vmem [resolvable:$true] %s78
      %81 = dma.vmem_to_hbm [thread:$0]  %s79, 128, %s1, [#allocation4]
    $region17: #{tpu_custom_call.1} parent=1 // pred_fallthru
      _
    // Predicated region
    $region18: #{tpu_custom_call.1} parent=1 // pred_check
      _
    $region19: #{tpu_custom_call.1} parent=1 // pred_check_branch
      %83 = sbr.rel (0) target = $region21
    $region20: #{tpu_custom_call.1} parent=1 // pred_region
      %84 = dma.done [#allocation4], 128
    $region21: #{tpu_custom_call.1} parent=1 // pred_fallthru
      _
    %85 = vsyncpa [#allocation3], 1
    %86 = vsyncpa [#allocation4], 1

</llo_original>
